<compile_context>
chip_gen: v7x
topology: tpu7x:2x2x1
jax: 0.10.0
libtpu: 0.0.40
codegen_flags: <defaults>
</compile_context>

<pallas_src>
import jax
import jax.numpy as jnp
from jax.experimental import pallas as pl
from jax.experimental.pallas import tpu as pltpu


def mixed_gate_kernel(alpha_ref, x_ref, o_ref):
    # alpha_ref: (1, 1) SMEM scalar, alpha = sigmoid(AND_param) (precomputed).
    # x_ref:     (P, tb, td) VMEM tile of parent node values.
    # o_ref:     (tb, td)    VMEM output tile.
    alpha = alpha_ref[0, 0]
    num_parents = x_ref.shape[0]

    # Fused parent reduction: one (tb, td) slab resident at a time (+ 2 f32
    # accumulators) instead of a full (P, tb, td) f32 copy and a (1-x) temp.
    # P is small (gate fan-in), so a static unrolled loop is fine.
    x0 = x_ref[0].astype(jnp.float32)
    and_acc = x0                                   # running prod_p x[p]
    nor_acc = 1.0 - x0                             # running prod_p (1 - x[p])
    for p in range(1, num_parents):
        xp = x_ref[p].astype(jnp.float32)
        and_acc = and_acc * xp
        nor_acc = nor_acc * (1.0 - xp)

    or_value = 1.0 - nor_acc
    # MIXED = alpha*AND + (1-alpha)*OR == OR + alpha*(AND - OR)
    out = or_value + alpha * (and_acc - or_value)
    o_ref[...] = out.astype(o_ref.dtype)


def _sublane_min(dtype) -> int:
    itemsize = jnp.dtype(dtype).itemsize
    return {4: 8, 2: 16, 1: 32}.get(itemsize, 8)


def _round_up(n, m):
    return (n + m - 1) // m * m


def _vmem_limit_bytes() -> int:
    """Generation-aware scoped-VMEM limit (~65% of physical)."""
    try:
        cap = int(pltpu.get_tpu_info().vmem_capacity_bytes)
    except Exception:
        cap = 64 << 20  # v7x per-TC VMEM; conservative fallback
    return max(32 << 20, min(int(cap * 0.65), 100 << 20))


def _pick_td(P, D, itemsize, sub, budget):
    """Feature tile: full D unless D tiles cleanly into multiples of 128 and the
    minimal (P, sub, D) block would blow the per-block budget."""
    if D % 128 != 0:
        return D                      # full dim is always layout-legal
    td = D
    while td % 256 == 0 and P * sub * td * itemsize > budget:
        td //= 2                      # stays a multiple of 128 and a divisor of D
    return td


def _pick_tb(P, B, td, itemsize, sub, budget):
    """Largest batch tile (multiple of the sublane minimum) whose (P, tb, td)
    input block fits the budget; prefer >= 4 grid steps when that does not
    shrink the block below ~1 MiB of input."""
    bytes_per_row = max(1, P * td * itemsize)
    max_tb = max(sub, (budget // bytes_per_row) // sub * sub)
    b_pad = _round_up(B, sub)
    tb = min(max_tb, b_pad)

    min_useful_tb = max(sub, ((1 << 20) // bytes_per_row) // sub * sub)
    split_tb = max(sub, (b_pad // 4) // sub * sub)   # >= 4 steps -> 2/TC on v7x
    if split_tb >= min_useful_tb:
        tb = min(tb, split_tb)
    return tb


def mixed_gate(x, and_param, *, tb=None, td=None):
    """x: (P, B, D) parent node values; and_param: scalar raw (pre-sigmoid) parameter."""
    P, B, D = x.shape
    dtype = x.dtype
    itemsize = jnp.dtype(dtype).itemsize
    sub = _sublane_min(dtype)

    vmem_limit = _vmem_limit_bytes()
    block_budget = max(1 << 20, vmem_limit // 4)   # 2x in + 2x out buffers + accs

    if td is None:
        td = _pick_td(P, D, itemsize, sub, block_budget)
    if tb is None:
        tb = _pick_tb(P, B, td, itemsize, sub, block_budget)

    # sigmoid of the scalar parameter once, outside the per-step kernel body.
    alpha = jax.nn.sigmoid(jnp.asarray(and_param, dtype=jnp.float32)).reshape(1, 1)

    grid = (int(pl.cdiv(B, tb)), int(pl.cdiv(D, td)))   # tail blocks allowed (no pad/slice)

    cost = pl.CostEstimate(
        flops=(2 * P + 3) * B * D,
        transcendentals=0,
        bytes_accessed=(P * B * D + B * D) * itemsize,
    )

    out = pl.pallas_call(
        mixed_gate_kernel,
        out_shape=jax.ShapeDtypeStruct((B, D), dtype),
        grid_spec=pltpu.PrefetchScalarGridSpec(
            num_scalar_prefetch=0,
            grid=grid,
            in_specs=[
                pl.BlockSpec(memory_space=pltpu.SMEM),              # alpha scalar
                pl.BlockSpec((P, tb, td), lambda i, j: (0, i, j)),  # x tile (full P)
            ],
            out_specs=pl.BlockSpec((tb, td), lambda i, j: (i, j)),  # lane-dense output
        ),
        compiler_params=pltpu.CompilerParams(
            dimension_semantics=("parallel", "parallel"),
            vmem_limit_bytes=vmem_limit,
        ),
        cost_estimate=cost,
    )(alpha, x)

    return out

    # TODO(synk): for very large parent counts P, add a trailing "arbitrary"
    # grid axis over P with two (tb, td) f32 VMEM scratch accumulators
    # (running prod x and prod(1-x)) so per-step VMEM is ~tb*td, not P*tb*td.


def mixed_gate_ref(x, and_param):
    alpha = jax.nn.sigmoid(jnp.asarray(and_param, dtype=jnp.float32))
    xf = x.astype(jnp.float32)
    and_value = jnp.prod(xf, axis=0)
    or_value = 1.0 - jnp.prod(1.0 - xf, axis=0)
    return (alpha * and_value + (1.0 - alpha) * or_value).astype(x.dtype)


if __name__ == "__main__":
    # Deterministic small setup: 2 parent nodes, batch 32, feature dim 128.
    P, B, D = 2, 32, 128
    AND_param = 0.3  # raw parameter; alpha = sigmoid(0.3)

    key = jax.random.PRNGKey(0)
    x = jax.random.uniform(key, (P, B, D), dtype=jnp.float32)  # node states in [0, 1]

    out = mixed_gate(x, AND_param)
    out = jax.block_until_ready(out)

    ref = mixed_gate_ref(x, AND_param)
    assert out.shape == (B, D)
    assert jnp.allclose(out, ref, atol=1e-6, rtol=1e-6), "mismatch vs reference"

    # Non-multiple-of-8 batch (exercises the no-pad ragged tail block).
    x_odd = jax.random.uniform(jax.random.PRNGKey(1), (P, 13, D), dtype=jnp.float32)
    out_odd = jax.block_until_ready(mixed_gate(x_odd, AND_param))
    assert out_odd.shape == (13, D)
    assert jnp.allclose(out_odd, mixed_gate_ref(x_odd, AND_param), atol=1e-6, rtol=1e-6)

    # bf16 input path (half the HBM bytes, f32 compute inside the kernel).
    x_bf16 = x.astype(jnp.bfloat16)
    out_bf16 = jax.block_until_ready(mixed_gate(x_bf16, AND_param))
    assert out_bf16.shape == (B, D)
    assert jnp.allclose(out_bf16.astype(jnp.float32),
                        mixed_gate_ref(x_bf16, AND_param).astype(jnp.float32),
                        atol=1e-2, rtol=1e-2)

    # Three parents (exercises the fused unrolled reduction beyond P=2).
    x3 = jax.random.uniform(jax.random.PRNGKey(2), (3, 24, D), dtype=jnp.float32)
    out3 = jax.block_until_ready(mixed_gate(x3, AND_param))
    assert out3.shape == (24, D)
    assert jnp.allclose(out3, mixed_gate_ref(x3, AND_param), atol=1e-6, rtol=1e-6)

    print("KERNEL_OK")
</pallas_src>

<mosaic_0001>
module attributes {stable_mosaic.version = 11 : i64} {
  func.func @mixed_gate_kernel(%arg0: i32, %arg1: i32, %arg2: memref<1x1xf32, #tpu.memory_space<smem>>, %arg3: memref<2x32x128xf32, #tpu.memory_space<vmem>>, %arg4: memref<32x128xf32, #tpu.memory_space<vmem>>) attributes {dimension_semantics = [#tpu.dimension_semantics<parallel>, #tpu.dimension_semantics<parallel>], iteration_bounds = array<i64: 1, 1>, scalar_prefetch = 0 : i64, scratch_operands = 0 : i64, tpu.core_type = #tpu.core_type<tc>, window_params = [{transform_indices = @transform_0, window_bounds = array<i64: 1, 1>}, {transform_indices = @transform_1, window_bounds = array<i64: 2, 32, 128>}, {transform_indices = @transform_2, window_bounds = array<i64: 32, 128>}]} {
    %c0 = arith.constant 0 : index
    %c0_0 = arith.constant 0 : index
    %0 = memref.load %arg2[%c0, %c0_0] : memref<1x1xf32, #tpu.memory_space<smem>>
    %c0_1 = arith.constant 0 : index
    %c0_2 = arith.constant 0 : index
    %c0_3 = arith.constant 0 : index
    %1 = vector.load %arg3[%c0_1, %c0_2, %c0_3] : memref<2x32x128xf32, #tpu.memory_space<vmem>>, vector<1x32x128xf32>
    %2 = vector.shape_cast %1 : vector<1x32x128xf32> to vector<32x128xf32>
    %cst = arith.constant 1.000000e+00 : f32
    %3 = vector.broadcast %cst : f32 to vector<32x128xf32>
    %4 = arith.subf %3, %2 : vector<32x128xf32>
    %c1 = arith.constant 1 : index
    %c0_4 = arith.constant 0 : index
    %c0_5 = arith.constant 0 : index
    %5 = vector.load %arg3[%c1, %c0_4, %c0_5] : memref<2x32x128xf32, #tpu.memory_space<vmem>>, vector<1x32x128xf32>
    %6 = vector.shape_cast %5 : vector<1x32x128xf32> to vector<32x128xf32>
    %7 = arith.mulf %2, %6 : vector<32x128xf32>
    %cst_6 = arith.constant 1.000000e+00 : f32
    %8 = vector.broadcast %cst_6 : f32 to vector<32x128xf32>
    %9 = arith.subf %8, %6 : vector<32x128xf32>
    %10 = arith.mulf %4, %9 : vector<32x128xf32>
    %cst_7 = arith.constant 1.000000e+00 : f32
    %11 = vector.broadcast %cst_7 : f32 to vector<32x128xf32>
    %12 = arith.subf %11, %10 : vector<32x128xf32>
    %13 = arith.subf %7, %12 : vector<32x128xf32>
    %14 = vector.broadcast %0 : f32 to vector<32x128xf32>
    %15 = arith.mulf %14, %13 : vector<32x128xf32>
    %16 = arith.addf %12, %15 : vector<32x128xf32>
    %c0_8 = arith.constant 0 : index
    %c0_9 = arith.constant 0 : index
    %17 = vector.load %arg4[%c0_8, %c0_9] : memref<32x128xf32, #tpu.memory_space<vmem>>, vector<32x128xf32>
    tpu.vector_store %arg4[%c0_8, %c0_9], %16 {strides = array<i32>} : memref<32x128xf32, #tpu.memory_space<vmem>>, vector<32x128xf32>,
    return
  }
  func.func @transform_0(%arg0: i32, %arg1: i32) -> (i32, i32) {
    %c0_i32 = arith.constant 0 : i32
    %c0_i32_0 = arith.constant 0 : i32
    %c0_i32_1 = arith.constant 0 : i32
    return %c0_i32, %c0_i32_0 : i32, i32
  }
  func.func @transform_1(%arg0: i32, %arg1: i32) -> (i32, i32, i32) {
    %c0_i32 = arith.constant 0 : i32
    %c0_i32_0 = arith.constant 0 : i32
    return %c0_i32, %arg0, %arg1 : i32, i32, i32
  }
  func.func @transform_2(%arg0: i32, %arg1: i32) -> (i32, i32) {
    %c0_i32 = arith.constant 0 : i32
    return %arg0, %arg1 : i32, i32
  }
}

</mosaic_0001>

<llo_original>
// kernel: tpu_custom_call.1
$region0: #{tpu_custom_call.1}
  #allocation0 [shape = 'u32[]', space=smem, size = 0x4, offset = 0x4, fixed_abs, tag = 'smem constant byte address 0x4 - core index']
  #allocation1 [shape = 'u32[144,128]{1,0:T(1,128)}', space=vmem, size = 0x12000, scoped, tag = 'internal scratch']
  #allocation2 [shape = 'f32[1,1]{1,0:T(1,128)S(6)}', space=smem, size = 0x200, scoped, tag = 'scoped memory for tpu_custom_call.1']
  %s0 = inlined_call_operand.<no memory space> [shape: f32[1,1], index: 0, kind: input, shape index: {}]
  %s1 = inlined_call_operand.hbm [shape: f32[2,32,128], index: 1, kind: input, shape index: {}]
  %s2 = inlined_call_operand.hbm [shape: f32[32,128], index: 2, kind: output, shape index: {}]
  %s3 = sld [smem:[#allocation0]]
  $region22: #{tpu_custom_call.1} parent=0
    _
  %s5 = ssub.s32 1, %s3
  %s6 = scalar_select 0, %s5, %s3
  %7 = sst [smem:[#allocation2]] %s0
  $region1: #{tpu_custom_call.1} parent=0
    #allocation3 [shape = 'u8[32768]{0}', space=vmem, size = 0x8000, scoped, tag = 'input window, operand 1, single buffered']
    #allocation4 [shape = 's32[1]{0}', space=sflag, size = 0x4, scoped, tag = 'scoped memory for tpu_custom_call.1']
    #allocation5 [shape = 's32[1]{0}', space=sflag, size = 0x4, scoped, tag = 'scoped memory for tpu_custom_call.1']
    #allocation6 [shape = 'u8[16384]{0}', space=vmem, size = 0x4000, scoped, tag = 'output window, operand 0, single buffered']
    %8 = vsyncpa [#allocation4], 0
    %9 = vsyncpa [#allocation5], 0
    // Predicated region
    $region2: #{tpu_custom_call.1} parent=1 // pred_check
      _
    $region3: #{tpu_custom_call.1} parent=1 // pred_check_branch
      %11 = sbr.rel (0) target = $region5
    $region4: #{tpu_custom_call.1} parent=1 // pred_region
      _
    $region5: #{tpu_custom_call.1} parent=1 // pred_fallthru
      _
    // Predicated region
    $region6: #{tpu_custom_call.1} parent=1 // pred_check
      _
    $region7: #{tpu_custom_call.1} parent=1 // pred_check_branch
      %13 = sbr.rel (0) target = $region9
    $region8: #{tpu_custom_call.1} parent=1 // pred_region
      %s15 = ssub.s32 1024, 1024
      %16 = vsyncadd [#allocation4], %s15
      %s17 = sshll.u32 [#allocation3], 4
      %s18 = int_to_ptr.vmem [resolvable:$true] %s17
      %23 = dma.hbm_to_vmem [thread:$0]  %s1, 1024, %s18, [#allocation4], 128, 128, 8
    $region9: #{tpu_custom_call.1} parent=1 // pred_fallthru
      _
    // Predicated region
    $region10: #{tpu_custom_call.1} parent=1 // pred_check
      _
    $region11: #{tpu_custom_call.1} parent=1 // pred_check_branch
      %25 = sbr.rel (0) target = $region13
    $region12: #{tpu_custom_call.1} parent=1 // pred_region
      %26 = dma.done [#allocation4], 1024
    $region13: #{tpu_custom_call.1} parent=1 // pred_fallthru
      _
    %s27 = sld [smem:[#allocation2]]
    %v28 = vld [vmem:[#allocation3] sm:$0xff]
    %v29 = vld [vmem:[#allocation3 + $0x8] sm:$0xff]
    %v30 = vld [vmem:[#allocation3 + $0x10] sm:$0xff]
    %v31 = vld [vmem:[#allocation3 + $0x18] sm:$0xff]
    %v32 = vsub.f32 1.0, %v28
    %v33 = vsub.f32 1.0, %v29
    %v34 = vsub.f32 1.0, %v30
    %v35 = vsub.f32 1.0, %v31
    %s36 = scalar_lea.vmem [#allocation3], 32
    %v37 = vld [vmem:[%s36] sm:$0xff]
    %v38 = vld [vmem:[%s36 + $0x8] sm:$0xff]
    %v39 = vld [vmem:[%s36 + $0x10] sm:$0xff]
    %v40 = vld [vmem:[%s36 + $0x18] sm:$0xff]
    %v41 = vmul.f32 %v28, %v37
    %v42 = vmul.f32 %v29, %v38
    %v43 = vmul.f32 %v30, %v39
    %v44 = vmul.f32 %v31, %v40
    %v45 = vsub.f32 1.0, %v37
    %v46 = vsub.f32 1.0, %v38
    %v47 = vsub.f32 1.0, %v39
    %v48 = vsub.f32 1.0, %v40
    %v49 = vmul.f32 %v32, %v45
    %v50 = vmul.f32 %v33, %v46
    %v51 = vmul.f32 %v34, %v47
    %v52 = vmul.f32 %v35, %v48
    %v53 = vsub.f32 1.0, %v49
    %v54 = vsub.f32 1.0, %v50
    %v55 = vsub.f32 1.0, %v51
    %v56 = vsub.f32 1.0, %v52
    %v57 = vsub.f32 %v41, %v53
    %v58 = vsub.f32 %v42, %v54
    %v59 = vsub.f32 %v43, %v55
    %v60 = vsub.f32 %v44, %v56
    %v61 = vstv %s27
    %v62 = vmul.f32 %v61, %v57
    %v63 = vmul.f32 %v61, %v58
    %v64 = vmul.f32 %v61, %v59
    %v65 = vmul.f32 %v61, %v60
    %v66 = vadd.f32 %v53, %v62
    %v67 = vadd.f32 %v54, %v63
    %v68 = vadd.f32 %v55, %v64
    %v69 = vadd.f32 %v56, %v65
    %70 = vst [vmem:[#allocation6] sm:$0xff] %v66
    %71 = vst [vmem:[#allocation6 + $0x8] sm:$0xff] %v67
    %72 = vst [vmem:[#allocation6 + $0x10] sm:$0xff] %v68
    %73 = vst [vmem:[#allocation6 + $0x18] sm:$0xff] %v69
    // Predicated region
    $region14: #{tpu_custom_call.1} parent=1 // pred_check
      _
    $region15: #{tpu_custom_call.1} parent=1 // pred_check_branch
      %75 = sbr.rel (0) target = $region17
    $region16: #{tpu_custom_call.1} parent=1 // pred_region
      %s77 = ssub.s32 512, 512
      %78 = vsyncadd [#allocation5], %s77
      %s79 = sshll.u32 [#allocation6], 4
      %s80 = int_to_ptr.vmem [resolvable:$true] %s79
      %85 = dma.vmem_to_hbm [thread:$0]  %s80, 512, %s2, [#allocation5], 128, 128, 8
    $region17: #{tpu_custom_call.1} parent=1 // pred_fallthru
      _
    // Predicated region
    $region18: #{tpu_custom_call.1} parent=1 // pred_check
      _
    $region19: #{tpu_custom_call.1} parent=1 // pred_check_branch
      %87 = sbr.rel (0) target = $region21
    $region20: #{tpu_custom_call.1} parent=1 // pred_region
      %88 = dma.done [#allocation5], 512
    $region21: #{tpu_custom_call.1} parent=1 // pred_fallthru
      _
    %89 = vsyncpa [#allocation4], 1
    %90 = vsyncpa [#allocation5], 1

</llo_original>
